<compile_context>
chip_gen: v7x
topology: tpu7x:2x2x1
jax: 0.10.0
libtpu: 0.0.40
codegen_flags: <defaults>
</compile_context>

<pallas_src>
import functools

import jax
import jax.numpy as jnp
from jax.experimental import pallas as pl
from jax.experimental.pallas import tpu as pltpu


def _cdiv(a: int, b: int) -> int:
    return -(-a // b)


def _vmem_budget(n_streams: int):
    """Generation-aware (vmem_limit_bytes, per-stream block bytes)."""
    phys = 64 << 20
    try:
        info = pltpu.get_tpu_info()
        phys = int(getattr(info, "vmem_capacity_bytes", phys)) or phys
    except Exception:
        pass
    if phys >= (128 << 20):          # v5e / v6e: 128 MiB physical VMEM
        vmem_limit = 96 << 20
        stream_cap = 8 << 20
    else:                            # v7x: 64 MiB per TensorCore
        vmem_limit = 48 << 20
        stream_cap = 4 << 20
    # double-buffered streams + headroom for in-kernel temporaries / scratch
    per_stream = min(stream_cap, vmem_limit // (2 * n_streams + 2))
    return vmem_limit, max(per_stream, 8 * 128 * 4)


# --------------------------------------------------------------------------
# Kernels
# --------------------------------------------------------------------------
def _elementwise_kernel(x_ref, t_ref, out_ref, *, loss_type: str,
                        weight_valid: float, plane_size: float):
    """reduction='none': each block holds TB whole spatial planes."""
    x = x_ref[...].astype(jnp.float32)
    t = t_ref[...].astype(jnp.float32)

    mask = (t < 1.0).astype(jnp.float32)
    valid = jnp.sum(mask, axis=-1, keepdims=True)              # (TB, 1)
    invalid = jnp.float32(plane_size) - valid                  # complement
    valid = jnp.where(valid <= 1e-6, 1.0, valid)
    invalid = jnp.where(invalid <= 1e-6, 1.0, invalid)
    a = weight_valid / valid                                    # (TB, 1)
    b = (1.0 - weight_valid) / invalid                          # (TB, 1)

    diff = x - t
    raw = jnp.abs(diff) if loss_type == "l1" else diff * diff
    out_ref[...] = (raw * (mask * a + (1.0 - mask) * b)).astype(out_ref.dtype)


def _partial_sum_kernel(x_ref, t_ref, out_ref, svm_ref, sraw_ref, scnt_ref, *,
                        loss_type: str, weight_valid: float, plane_size: float):
    """reduction='sum'/'mean': masked partial sums, lane axis tileable."""
    j = pl.program_id(1)

    @pl.when(j == 0)
    def _():
        svm_ref[...] = jnp.zeros_like(svm_ref)
        sraw_ref[...] = jnp.zeros_like(sraw_ref)
        scnt_ref[...] = jnp.zeros_like(scnt_ref)

    x = x_ref[...].astype(jnp.float32)
    t = t_ref[...].astype(jnp.float32)
    mask = (t < 1.0).astype(jnp.float32)
    diff = x - t
    raw = jnp.abs(diff) if loss_type == "l1" else diff * diff

    svm_ref[...] += jnp.sum(raw * mask, axis=-1, keepdims=True)   # sum raw*mask
    sraw_ref[...] += jnp.sum(raw, axis=-1, keepdims=True)         # sum raw
    scnt_ref[...] += jnp.sum(mask, axis=-1, keepdims=True)        # sum mask

    @pl.when(j == pl.num_programs(1) - 1)
    def _():
        valid = scnt_ref[...]
        invalid = jnp.float32(plane_size) - valid
        valid = jnp.where(valid <= 1e-6, 1.0, valid)
        invalid = jnp.where(invalid <= 1e-6, 1.0, invalid)
        a = weight_valid / valid
        b = (1.0 - weight_valid) / invalid
        s_valid = svm_ref[...]
        s_invalid = sraw_ref[...] - s_valid
        row_loss = a * s_valid + b * s_invalid                    # (TB, 1)
        # splat the block partial sum into an aligned (8, 128) tile
        out_ref[...] = jnp.full(out_ref.shape, jnp.sum(row_loss),
                                dtype=out_ref.dtype)


# --------------------------------------------------------------------------
# Wrapper
# --------------------------------------------------------------------------
def weighted_loss(inp, target, *, loss_type="l1", weight_valid=0.8,
                  reduction="mean", _block_bytes_override=None):
    """JAX/Pallas equivalent of WeightedLoss.forward. inp/target: (B, C, H, W)."""
    assert inp.shape == target.shape and inp.ndim == 4
    if loss_type not in ("l1", "mse"):
        raise ValueError(f"unsupported loss_type: {loss_type}")
    if reduction not in ("none", "sum", "mean"):
        raise ValueError(f"unsupported reduction: {reduction}")

    B, C, H, W = inp.shape
    BC, HW = B * C, H * W

    x = inp.reshape(BC, HW)
    t = target.reshape(BC, HW)

    elementwise = reduction == "none"
    n_streams = 3 if elementwise else 2
    vmem_limit, block_bytes = _vmem_budget(n_streams)
    if _block_bytes_override is not None:
        block_bytes = max(int(_block_bytes_override), 8 * 128 * 4)

    # lane-dense layout: last dim a multiple of 128
    hw128 = _cdiv(HW, 128) * 128
    row_bytes = hw128 * 4

    if elementwise or 8 * row_bytes <= block_bytes:
        # whole spatial planes per block
        tb = (block_bytes // row_bytes) // 8 * 8
        tb = max(8, min(tb, _cdiv(BC, 8) * 8))
        # v7x megacore: guarantee >= 2 row blocks whenever possible
        if BC > 8 and _cdiv(BC, tb) < 2:
            tb = max(8, _cdiv(_cdiv(BC, 2), 8) * 8)
        tc = hw128
        # TODO(synk): for reduction='none' with very large planes the whole-row
        # block can exceed the per-stream budget; column tiling there would
        # need the per-row counts ahead of the elementwise pass (two passes).
    else:
        # large planes (sum/mean only): tile the lane axis as well
        tb = 8
        tc = max(128, min(hw128, (block_bytes // (8 * 4)) // 128 * 128))

    n_row_blocks = _cdiv(BC, tb)
    n_col_blocks = _cdiv(hw128, tc)
    bc_pad = n_row_blocks * tb
    hw_pad = n_col_blocks * tc

    if bc_pad != BC or hw_pad != HW:
        # pad BOTH tensors with 1.0: mask = (t < 1) = 0 and diff = 0 on the
        # padding, so per-plane counts and loss sums are exactly preserved.
        x = jnp.pad(x, ((0, bc_pad - BC), (0, hw_pad - HW)), constant_values=1.0)
        t = jnp.pad(t, ((0, bc_pad - BC), (0, hw_pad - HW)), constant_values=1.0)

    if elementwise:
        kernel = functools.partial(
            _elementwise_kernel, loss_type=loss_type,
            weight_valid=float(weight_valid), plane_size=float(HW))
        out = pl.pallas_call(
            kernel,
            out_shape=jax.ShapeDtypeStruct((bc_pad, hw_pad), jnp.float32),
            grid=(n_row_blocks,),
            in_specs=[pl.BlockSpec((tb, hw_pad), lambda i: (i, 0)),
                      pl.BlockSpec((tb, hw_pad), lambda i: (i, 0))],
            out_specs=pl.BlockSpec((tb, hw_pad), lambda i: (i, 0)),
            compiler_params=pltpu.CompilerParams(
                dimension_semantics=("parallel",),
                vmem_limit_bytes=vmem_limit),
        )(x, t)
        return out[:BC, :HW].reshape(B, C, H, W)

    kernel = functools.partial(
        _partial_sum_kernel, loss_type=loss_type,
        weight_valid=float(weight_valid), plane_size=float(HW))
    partials = pl.pallas_call(
        kernel,
        out_shape=jax.ShapeDtypeStruct((8, n_row_blocks * 128), jnp.float32),
        grid=(n_row_blocks, n_col_blocks),
        in_specs=[pl.BlockSpec((tb, tc), lambda i, j: (i, j)),
                  pl.BlockSpec((tb, tc), lambda i, j: (i, j))],
        out_specs=pl.BlockSpec((8, 128), lambda i, j: (0, i)),
        scratch_shapes=[pltpu.VMEM((tb, 1), jnp.float32)] * 3,
        compiler_params=pltpu.CompilerParams(
            dimension_semantics=("parallel", "arbitrary"),
            vmem_limit_bytes=vmem_limit),
    )(x, t)

    # each (8, 128) tile is the same block partial sum splatted 1024x
    total = jnp.sum(partials) * (1.0 / 1024.0)
    if reduction == "sum":
        return total
    return total / jnp.float32(BC * HW)


# --------------------------------------------------------------------------
# Pure-JAX reference mirroring the PyTorch forward
# --------------------------------------------------------------------------
def _reference(inp, target, *, loss_type, weight_valid, reduction):
    t = target.astype(jnp.float32)
    x = inp.astype(jnp.float32)
    mask = (t < 1.0).astype(jnp.float32)
    mask_sum = mask.sum(axis=(-1, -2), keepdims=True)
    mask_sum = jnp.where(mask_sum <= 1e-6, 1.0, mask_sum)
    weights = weight_valid * mask / mask_sum
    mask = 1.0 - mask
    mask_sum = mask.sum(axis=(-1, -2), keepdims=True)
    mask_sum = jnp.where(mask_sum <= 1e-6, 1.0, mask_sum)
    weights = weights + (1.0 - weight_valid) * mask / mask_sum
    raw = jnp.abs(x - t) if loss_type == "l1" else (x - t) ** 2
    loss = raw * weights
    if reduction == "none":
        return loss
    if reduction == "sum":
        return loss.sum()
    return loss.mean()


if __name__ == "__main__":
    key = jax.random.PRNGKey(0)
    k1, k2, k3, k4, k5, k6 = jax.random.split(key, 6)

    B, C, H, W = 2, 4, 16, 16
    inp = jax.random.normal(k1, (B, C, H, W), dtype=jnp.float32)
    # targets roughly in [0, 2) so that (target < 1) mask is non-trivial
    target = jax.random.uniform(k2, (B, C, H, W), dtype=jnp.float32) * 2.0

    # mean / L1
    out = jax.block_until_ready(
        weighted_loss(inp, target, loss_type="l1", weight_valid=0.8,
                      reduction="mean"))
    ref = _reference(inp, target, loss_type="l1", weight_valid=0.8,
                     reduction="mean")
    assert jnp.allclose(out, ref, rtol=1e-5, atol=1e-5), (out, ref)

    # sum / MSE
    out_sum = jax.block_until_ready(
        weighted_loss(inp, target, loss_type="mse", weight_valid=0.8,
                      reduction="sum"))
    ref_sum = _reference(inp, target, loss_type="mse", weight_valid=0.8,
                         reduction="sum")
    assert jnp.allclose(out_sum, ref_sum, rtol=1e-5, atol=1e-5), (out_sum, ref_sum)

    # elementwise ('none') / L1
    out_none = jax.block_until_ready(
        weighted_loss(inp, target, loss_type="l1", weight_valid=0.8,
                      reduction="none"))
    ref_none = _reference(inp, target, loss_type="l1", weight_valid=0.8,
                          reduction="none")
    assert jnp.allclose(out_none, ref_none, rtol=1e-5, atol=1e-5)

    # non-multiple-of-8 plane count exercises the row-padding path
    inp2 = jax.random.normal(k3, (1, 3, 16, 16), dtype=jnp.float32)
    tgt2 = jax.random.uniform(k4, (1, 3, 16, 16), dtype=jnp.float32) * 2.0
    out2 = jax.block_until_ready(
        weighted_loss(inp2, tgt2, loss_type="l1", weight_valid=0.8,
                      reduction="mean"))
    ref2 = _reference(inp2, tgt2, loss_type="l1", weight_valid=0.8,
                      reduction="mean")
    assert jnp.allclose(out2, ref2, rtol=1e-5, atol=1e-5), (out2, ref2)

    # non-multiple-of-128 lane count exercises the lane-padding path
    inp3 = jax.random.normal(k5, (2, 4, 16, 20), dtype=jnp.float32)
    tgt3 = jax.random.uniform(k6, (2, 4, 16, 20), dtype=jnp.float32) * 2.0
    for red in ("mean", "none"):
        o3 = jax.block_until_ready(
            weighted_loss(inp3, tgt3, loss_type="l1", weight_valid=0.8,
                          reduction=red))
        r3 = _reference(inp3, tgt3, loss_type="l1", weight_valid=0.8,
                        reduction=red)
        assert jnp.allclose(o3, r3, rtol=1e-5, atol=1e-5)

    # force the column-tiled (two grid axes, accumulator scratch) sum path
    out_ct = jax.block_until_ready(
        weighted_loss(inp, target, loss_type="mse", weight_valid=0.8,
                      reduction="sum", _block_bytes_override=8 * 128 * 4))
    assert jnp.allclose(out_ct, ref_sum, rtol=1e-5, atol=1e-5), (out_ct, ref_sum)

    print("KERNEL_OK")
</pallas_src>

<mosaic_0001>
module attributes {stable_mosaic.version = 11 : i64} {
  func.func @_partial_sum_kernel(%arg0: i32, %arg1: i32, %arg2: memref<8x256xf32, #tpu.memory_space<vmem>>, %arg3: memref<8x256xf32, #tpu.memory_space<vmem>>, %arg4: memref<8x128xf32, #tpu.memory_space<vmem>>, %arg5: memref<8x1xf32, #tpu.memory_space<vmem>>, %arg6: memref<8x1xf32, #tpu.memory_space<vmem>>, %arg7: memref<8x1xf32, #tpu.memory_space<vmem>>) attributes {dimension_semantics = [#tpu.dimension_semantics<parallel>, #tpu.dimension_semantics<arbitrary>], iteration_bounds = array<i64: 1, 1>, scalar_prefetch = 0 : i64, scratch_operands = 3 : i64, tpu.core_type = #tpu.core_type<tc>, window_params = [{transform_indices = @transform_0, window_bounds = array<i64: 8, 256>}, {transform_indices = @transform_1, window_bounds = array<i64: 8, 256>}, {transform_indices = @transform_2, window_bounds = array<i64: 8, 128>}]} {
    %c0_i32 = arith.constant 0 : i32
    %0 = arith.cmpi eq, %arg1, %c0_i32 : i32
    %1 = arith.extui %0 : i1 to i32
    %c0_i32_0 = arith.constant 0 : i32
    %2 = arith.cmpi ne, %1, %c0_i32_0 : i32
    scf.if %2 {
      %cst_21 = arith.constant 0.000000e+00 : f32
      %30 = vector.broadcast %cst_21 : f32 to vector<8x1xf32>
      %c0_22 = arith.constant 0 : index
      %c0_23 = arith.constant 0 : index
      %31 = vector.load %arg5[%c0_22, %c0_23] : memref<8x1xf32, #tpu.memory_space<vmem>>, vector<8x1xf32>
      tpu.vector_store %arg5[%c0_22, %c0_23], %30 {strides = array<i32>} : memref<8x1xf32, #tpu.memory_space<vmem>>, vector<8x1xf32>,
      %cst_24 = arith.constant 0.000000e+00 : f32
      %32 = vector.broadcast %cst_24 : f32 to vector<8x1xf32>
      %c0_25 = arith.constant 0 : index
      %c0_26 = arith.constant 0 : index
      %33 = vector.load %arg6[%c0_25, %c0_26] : memref<8x1xf32, #tpu.memory_space<vmem>>, vector<8x1xf32>
      tpu.vector_store %arg6[%c0_25, %c0_26], %32 {strides = array<i32>} : memref<8x1xf32, #tpu.memory_space<vmem>>, vector<8x1xf32>,
      %cst_27 = arith.constant 0.000000e+00 : f32
      %34 = vector.broadcast %cst_27 : f32 to vector<8x1xf32>
      %c0_28 = arith.constant 0 : index
      %c0_29 = arith.constant 0 : index
      %35 = vector.load %arg7[%c0_28, %c0_29] : memref<8x1xf32, #tpu.memory_space<vmem>>, vector<8x1xf32>
      tpu.vector_store %arg7[%c0_28, %c0_29], %34 {strides = array<i32>} : memref<8x1xf32, #tpu.memory_space<vmem>>, vector<8x1xf32>,
    } else {
    }
    %c0 = arith.constant 0 : index
    %c0_1 = arith.constant 0 : index
    %3 = vector.load %arg2[%c0, %c0_1] : memref<8x256xf32, #tpu.memory_space<vmem>>, vector<8x256xf32>
    %c0_2 = arith.constant 0 : index
    %c0_3 = arith.constant 0 : index
    %4 = vector.load %arg3[%c0_2, %c0_3] : memref<8x256xf32, #tpu.memory_space<vmem>>, vector<8x256xf32>
    %cst = arith.constant 1.000000e+00 : f32
    %5 = vector.broadcast %cst : f32 to vector<8x256xf32>
    %6 = arith.cmpf olt, %4, %5 : vector<8x256xf32>
    %7 = arith.extui %6 : vector<8x256xi1> to vector<8x256xi32>
    %8 = arith.sitofp %7 : vector<8x256xi32> to vector<8x256xf32>
    %9 = arith.subf %3, %4 : vector<8x256xf32>
    %10 = math.absf %9 : vector<8x256xf32>
    %c0_4 = arith.constant 0 : index
    %c0_5 = arith.constant 0 : index
    %11 = vector.load %arg5[%c0_4, %c0_5] : memref<8x1xf32, #tpu.memory_space<vmem>>, vector<8x1xf32>
    %12 = arith.mulf %10, %8 : vector<8x256xf32>
    %cst_6 = arith.constant dense<0.000000e+00> : vector<8xf32>
    %13 = vector.multi_reduction <add>, %12, %cst_6 [1] : vector<8x256xf32> to vector<8xf32>
    %14 = vector.shape_cast %13 : vector<8xf32> to vector<8x1xf32>
    %15 = arith.addf %11, %14 : vector<8x1xf32>
    %c0_7 = arith.constant 0 : index
    %c0_8 = arith.constant 0 : index
    %16 = vector.load %arg5[%c0_7, %c0_8] : memref<8x1xf32, #tpu.memory_space<vmem>>, vector<8x1xf32>
    tpu.vector_store %arg5[%c0_7, %c0_8], %15 {strides = array<i32>} : memref<8x1xf32, #tpu.memory_space<vmem>>, vector<8x1xf32>,
    %c0_9 = arith.constant 0 : index
    %c0_10 = arith.constant 0 : index
    %17 = vector.load %arg6[%c0_9, %c0_10] : memref<8x1xf32, #tpu.memory_space<vmem>>, vector<8x1xf32>
    %cst_11 = arith.constant dense<0.000000e+00> : vector<8xf32>
    %18 = vector.multi_reduction <add>, %10, %cst_11 [1] : vector<8x256xf32> to vector<8xf32>
    %19 = vector.shape_cast %18 : vector<8xf32> to vector<8x1xf32>
    %20 = arith.addf %17, %19 : vector<8x1xf32>
    %c0_12 = arith.constant 0 : index
    %c0_13 = arith.constant 0 : index
    %21 = vector.load %arg6[%c0_12, %c0_13] : memref<8x1xf32, #tpu.memory_space<vmem>>, vector<8x1xf32>
    tpu.vector_store %arg6[%c0_12, %c0_13], %20 {strides = array<i32>} : memref<8x1xf32, #tpu.memory_space<vmem>>, vector<8x1xf32>,
    %c0_14 = arith.constant 0 : index
    %c0_15 = arith.constant 0 : index
    %22 = vector.load %arg7[%c0_14, %c0_15] : memref<8x1xf32, #tpu.memory_space<vmem>>, vector<8x1xf32>
    %cst_16 = arith.constant dense<0.000000e+00> : vector<8xf32>
    %23 = vector.multi_reduction <add>, %8, %cst_16 [1] : vector<8x256xf32> to vector<8xf32>
    %24 = vector.shape_cast %23 : vector<8xf32> to vector<8x1xf32>
    %25 = arith.addf %22, %24 : vector<8x1xf32>
    %c0_17 = arith.constant 0 : index
    %c0_18 = arith.constant 0 : index
    %26 = vector.load %arg7[%c0_17, %c0_18] : memref<8x1xf32, #tpu.memory_space<vmem>>, vector<8x1xf32>
    tpu.vector_store %arg7[%c0_17, %c0_18], %25 {strides = array<i32>} : memref<8x1xf32, #tpu.memory_space<vmem>>, vector<8x1xf32>,
    %c0_i32_19 = arith.constant 0 : i32
    %27 = arith.cmpi eq, %arg1, %c0_i32_19 : i32
    %28 = arith.extui %27 : i1 to i32
    %c0_i32_20 = arith.constant 0 : i32
    %29 = arith.cmpi ne, %28, %c0_i32_20 : i32
    scf.if %29 {
      %c0_21 = arith.constant 0 : index
      %c0_22 = arith.constant 0 : index
      %30 = vector.load %arg7[%c0_21, %c0_22] : memref<8x1xf32, #tpu.memory_space<vmem>>, vector<8x1xf32>
      %cst_23 = arith.constant 2.560000e+02 : f32
      %31 = vector.broadcast %cst_23 : f32 to vector<8x1xf32>
      %32 = arith.subf %31, %30 : vector<8x1xf32>
      %cst_24 = arith.constant 9.99999997E-7 : f32
      %33 = vector.broadcast %cst_24 : f32 to vector<8x1xf32>
      %34 = arith.cmpf ole, %30, %33 : vector<8x1xf32>
      %cst_25 = arith.constant 1.000000e+00 : f32
      %35 = vector.broadcast %cst_25 : f32 to vector<8x1xf32>
      %36 = arith.select %34, %35, %30 : vector<8x1xi1>, vector<8x1xf32>
      %cst_26 = arith.constant 9.99999997E-7 : f32
      %37 = vector.broadcast %cst_26 : f32 to vector<8x1xf32>
      %38 = arith.cmpf ole, %32, %37 : vector<8x1xf32>
      %cst_27 = arith.constant 1.000000e+00 : f32
      %39 = vector.broadcast %cst_27 : f32 to vector<8x1xf32>
      %40 = arith.select %38, %39, %32 : vector<8x1xi1>, vector<8x1xf32>
      %cst_28 = arith.constant 8.000000e-01 : f32
      %41 = vector.broadcast %cst_28 : f32 to vector<8x1xf32>
      %42 = arith.divf %41, %36 : vector<8x1xf32>
      %cst_29 = arith.constant 2.000000e-01 : f32
      %43 = vector.broadcast %cst_29 : f32 to vector<8x1xf32>
      %44 = arith.divf %43, %40 : vector<8x1xf32>
      %c0_30 = arith.constant 0 : index
      %c0_31 = arith.constant 0 : index
      %45 = vector.load %arg5[%c0_30, %c0_31] : memref<8x1xf32, #tpu.memory_space<vmem>>, vector<8x1xf32>
      %c0_32 = arith.constant 0 : index
      %c0_33 = arith.constant 0 : index
      %46 = vector.load %arg6[%c0_32, %c0_33] : memref<8x1xf32, #tpu.memory_space<vmem>>, vector<8x1xf32>
      %47 = arith.subf %46, %45 : vector<8x1xf32>
      %48 = arith.mulf %42, %45 : vector<8x1xf32>
      %49 = arith.mulf %44, %47 : vector<8x1xf32>
      %50 = arith.addf %48, %49 : vector<8x1xf32>
      %51 = vector.shape_cast %50 : vector<8x1xf32> to vector<1x8x1xf32>
      %cst_34 = arith.constant dense<0.000000e+00> : vector<1xf32>
      %52 = vector.multi_reduction <add>, %51, %cst_34 [1, 2] : vector<1x8x1xf32> to vector<1xf32>
      %53 = vector.shape_cast %52 : vector<1xf32> to vector<1x1x1xf32>
      %54 = vector.extract %53[0, 0, 0] : f32 from vector<1x1x1xf32>
      %55 = vector.broadcast %54 : f32 to vector<8x128xf32>
      %c0_35 = arith.constant 0 : index
      %c0_36 = arith.constant 0 : index
      %56 = vector.load %arg4[%c0_35, %c0_36] : memref<8x128xf32, #tpu.memory_space<vmem>>, vector<8x128xf32>
      tpu.vector_store %arg4[%c0_35, %c0_36], %55 {strides = array<i32>} : memref<8x128xf32, #tpu.memory_space<vmem>>, vector<8x128xf32>,
    } else {
    }
    return
  }
  func.func @transform_0(%arg0: i32, %arg1: i32) -> (i32, i32) {
    %c0_i32 = arith.constant 0 : i32
    return %arg0, %arg1 : i32, i32
  }
  func.func @transform_1(%arg0: i32, %arg1: i32) -> (i32, i32) {
    %c0_i32 = arith.constant 0 : i32
    return %arg0, %arg1 : i32, i32
  }
  func.func @transform_2(%arg0: i32, %arg1: i32) -> (i32, i32) {
    %c0_i32 = arith.constant 0 : i32
    %c0_i32_0 = arith.constant 0 : i32
    return %c0_i32, %arg0 : i32, i32
  }
}

</mosaic_0001>

<llo_original>
// kernel: tpu_custom_call.1
$region0: #{tpu_custom_call.1}
  #allocation0 [shape = 'u32[]', space=smem, size = 0x4, offset = 0x4, fixed_abs, tag = 'smem constant byte address 0x4 - core index']
  #allocation1 [shape = 'u32[144,128]{1,0:T(1,128)}', space=vmem, size = 0x12000, scoped, tag = 'internal scratch']
  #allocation2 [shape = 'f32[8,1]{1,0:T(8,128)}', space=vmem, size = 0x1000, scoped, tag = 'scratch operand']
  #allocation3 [shape = 'f32[8,1]{1,0:T(8,128)}', space=vmem, size = 0x1000, scoped, tag = 'scratch operand']
  #allocation4 [shape = 'f32[8,1]{1,0:T(8,128)}', space=vmem, size = 0x1000, scoped, tag = 'scratch operand']
  %s0 = inlined_call_operand.hbm [shape: f32[8,256], index: 0, kind: input, shape index: {}]
  %s1 = inlined_call_operand.hbm [shape: f32[8,256], index: 1, kind: input, shape index: {}]
  %s2 = inlined_call_operand.hbm [shape: f32[8,128], index: 2, kind: output, shape index: {}]
  %s3 = sld [smem:[#allocation0]]
  $region34: #{tpu_custom_call.1} parent=0
    _
  %s5 = ssub.s32 1, %s3
  %s6 = scalar_select 0, %s5, %s3
  $region1: #{tpu_custom_call.1} parent=0
    #allocation5 [shape = 'u8[8192]{0}', space=vmem, size = 0x2000, scoped, tag = 'input window, operand 0, single buffered']
    #allocation6 [shape = 's32[1]{0}', space=sflag, size = 0x4, scoped, tag = 'scoped memory for tpu_custom_call.1']
    #allocation7 [shape = 's32[1]{0}', space=sflag, size = 0x4, scoped, tag = 'scoped memory for tpu_custom_call.1']
    #allocation8 [shape = 'u8[8192]{0}', space=vmem, size = 0x2000, scoped, tag = 'input window, operand 1, single buffered']
    #allocation9 [shape = 's32[1]{0}', space=sflag, size = 0x4, scoped, tag = 'scoped memory for tpu_custom_call.1']
    #allocation10 [shape = 'u8[4096]{0}', space=vmem, size = 0x1000, scoped, tag = 'output window, operand 0, single buffered']
    %7 = vsyncpa [#allocation6], 0
    %8 = vsyncpa [#allocation9], 0
    %9 = vsyncpa [#allocation7], 0
    // Predicated region
    $region2: #{tpu_custom_call.1} parent=1 // pred_check
      _
    $region3: #{tpu_custom_call.1} parent=1 // pred_check_branch
      %11 = sbr.rel (0) target = $region5
    $region4: #{tpu_custom_call.1} parent=1 // pred_region
      %s13 = ssub.s32 256, 256
      %14 = vsyncadd [#allocation6], %s13
      %s16 = sshll.u32 [#allocation5], 4
      %s17 = int_to_ptr.vmem [resolvable:$true] %s16
      %19 = dma.hbm_to_vmem [thread:$0]  %s0, 256, %s17, [#allocation6]
    $region5: #{tpu_custom_call.1} parent=1 // pred_fallthru
      _
    // Predicated region
    $region6: #{tpu_custom_call.1} parent=1 // pred_check
      _
    $region7: #{tpu_custom_call.1} parent=1 // pred_check_branch
      %21 = sbr.rel (0) target = $region9
    $region8: #{tpu_custom_call.1} parent=1 // pred_region
      %s23 = ssub.s32 256, 256
      %24 = vsyncadd [#allocation9], %s23
      %s26 = sshll.u32 [#allocation8], 4
      %s27 = int_to_ptr.vmem [resolvable:$true] %s26
      %29 = dma.hbm_to_vmem [thread:$0]  %s1, 256, %s27, [#allocation9]
    $region9: #{tpu_custom_call.1} parent=1 // pred_fallthru
      _
    // Predicated region
    $region10: #{tpu_custom_call.1} parent=1 // pred_check
      _
    $region11: #{tpu_custom_call.1} parent=1 // pred_check_branch
      %31 = sbr.rel (0) target = $region13
    $region12: #{tpu_custom_call.1} parent=1 // pred_region
      %32 = dma.done [#allocation6], 256
    $region13: #{tpu_custom_call.1} parent=1 // pred_fallthru
      _
    // Predicated region
    $region14: #{tpu_custom_call.1} parent=1 // pred_check
      _
    $region15: #{tpu_custom_call.1} parent=1 // pred_check_branch
      %34 = sbr.rel (0) target = $region17
    $region16: #{tpu_custom_call.1} parent=1 // pred_region
      %35 = dma.done [#allocation9], 256
    $region17: #{tpu_custom_call.1} parent=1 // pred_fallthru
      _
    %p36 = scmp.eq.s32.totalorder 0, 0
    // Predicated region
    $region18: #{tpu_custom_call.1} parent=1 // pred_check
      %p37 = pneg %p36
    $region19: #{tpu_custom_call.1} parent=1 // pred_check_branch
      %39 = sbr.rel (%p37) target = $region21
    $region20: #{tpu_custom_call.1} parent=1 // pred_region
      %vm40 = vcmask 7168
      %41 = vst.msk [vmem:[#allocation2] sm:$0xff] %vm40, 0.0
      %42 = vst.msk [vmem:[#allocation3] sm:$0xff] %vm40, 0.0
      %43 = vst.msk [vmem:[#allocation4] sm:$0xff] %vm40, 0.0
    $region21: #{tpu_custom_call.1} parent=1 // pred_fallthru
      _
    %v44 = vld [vmem:[#allocation5] sm:$0xff]
    %v45 = vld [vmem:[#allocation5 + $0x8] sm:$0xff]
    %v46 = vld [vmem:[#allocation8] sm:$0xff]
    %v47 = vld [vmem:[#allocation8 + $0x8] sm:$0xff]
    %vm48 = vcmp.lt.f32.partialorder %v46, 1.0
    %vm49 = vcmp.lt.f32.partialorder %v47, 1.0
    %v50 = vsel %vm48, 1, 0
    %v51 = vsel %vm49, 1, 0
    %v52 = vcvt.s32.f32 %v50
    %v53 = vcvt.s32.f32 %v51
    %v54 = vsub.f32 %v44, %v46
    %v55 = vsub.f32 %v45, %v47
    %v56 = vand.u32 2147483647, %v54
    %v57 = vand.u32 2147483647, %v55
    %v58 = vld [vmem:[#allocation2] sm:$0xff]
    %v59 = vmul.f32 %v56, %v52
    %v60 = vmul.f32 %v57, %v53
    %v61 = vadd.f32 %v59, %v60
    %62 = vadd.xlane.f32.xlu0 %v61
    %v63 = vpop.xlane.xlu0 %62
    %v64 = vadd.f32 %v58, %v63
    %vm65 = vcmask 7168
    %66 = vst.msk [vmem:[#allocation2] sm:$0xff] %vm65, %v64
    %v67 = vld [vmem:[#allocation3] sm:$0xff]
    %v68 = vadd.f32 %v56, %v57
    %69 = vadd.xlane.f32.xlu0 %v68
    %v70 = vpop.xlane.xlu0 %69
    %v71 = vadd.f32 %v67, %v70
    %72 = vst.msk [vmem:[#allocation3] sm:$0xff] %vm65, %v71
    %v73 = vld [vmem:[#allocation4] sm:$0xff]
    %v74 = vadd.f32 %v52, %v53
    %75 = vadd.xlane.f32.xlu0 %v74
    %v76 = vpop.xlane.xlu0 %75
    %v77 = vadd.f32 %v73, %v76
    %78 = vst.msk [vmem:[#allocation4] sm:$0xff] %vm65, %v77
    // Predicated region
    $region22: #{tpu_custom_call.1} parent=1 // pred_check
      %p79 = pneg %p36
    $region23: #{tpu_custom_call.1} parent=1 // pred_check_branch
      %81 = sbr.rel (%p79) target = $region25
    $region24: #{tpu_custom_call.1} parent=1 // pred_region
      %v82 = vld [vmem:[#allocation4] sm:$0xff]
      %v83 = vsub.f32 256.0, %v82
      %vm84 = vcmp.le.f32.partialorder %v82, 1e-06
      %v85 = vsel %vm84, 1.0, %v82
      %vm86 = vcmp.le.f32.partialorder %v83, 1e-06
      %v87 = vsel %vm86, 1.0, %v83
      %v88 = vrcp.pop %v85
      %v89 = vmul.f32 0.8, %v88
      %v90 = vrcp.pop %v87
      %v91 = vmul.f32 0.2, %v90
      %v92 = vld [vmem:[#allocation2] sm:$0xff]
      %v93 = vld [vmem:[#allocation3] sm:$0xff]
      %v94 = vsub.f32 %v93, %v92
      %v95 = vmul.f32 %v89, %v92
      %v96 = vmul.f32 %v91, %v94
      %v97 = vadd.f32 %v95, %v96
      %v98 = vsel %vm65, %v97, 0.0
      %99 = vadd.xlane.f32.xlu0 %v98
      %v100 = vpop.xlane.xlu0 %99
      %v101 = vrot.slane %v100, 4
      %v102 = vadd.f32 %v100, %v101
      %v103 = vrot.slane %v102, 2
      %v104 = vadd.f32 %v102, %v103
      %v105 = vrot.slane %v104, 1
      %v106 = vadd.f32 %v104, %v105
      %s107 = vtos %v106
      %v108 = vstv %s107
      %109 = vst [vmem:[#allocation10] sm:$0xff] %v108
    $region25: #{tpu_custom_call.1} parent=1 // pred_fallthru
      _
    // Predicated region
    $region26: #{tpu_custom_call.1} parent=1 // pred_check
      _
    $region27: #{tpu_custom_call.1} parent=1 // pred_check_branch
      %111 = sbr.rel (0) target = $region29
    $region28: #{tpu_custom_call.1} parent=1 // pred_region
      %s113 = ssub.s32 128, 128
      %114 = vsyncadd [#allocation7], %s113
      %s116 = sshll.u32 [#allocation10], 4
      %s117 = int_to_ptr.vmem [resolvable:$true] %s116
      %119 = dma.vmem_to_hbm [thread:$0]  %s117, 128, %s2, [#allocation7]
    $region29: #{tpu_custom_call.1} parent=1 // pred_fallthru
      _
    // Predicated region
    $region30: #{tpu_custom_call.1} parent=1 // pred_check
      _
    $region31: #{tpu_custom_call.1} parent=1 // pred_check_branch
      %121 = sbr.rel (0) target = $region33
    $region32: #{tpu_custom_call.1} parent=1 // pred_region
      %122 = dma.done [#allocation7], 128
    $region33: #{tpu_custom_call.1} parent=1 // pred_fallthru
      _
    %123 = vsyncpa [#allocation6], 1
    %124 = vsyncpa [#allocation9], 1
    %125 = vsyncpa [#allocation7], 1

</llo_original>
